<compile_context>
chip_gen: v6e
topology: v6e:2x2x1
jax: 0.10.0
libtpu: 0.0.40
codegen_flags: <defaults>
</compile_context>

<pallas_src>
import functools

import jax
import jax.numpy as jnp
from jax.experimental import pallas as pl
from jax.experimental.pallas import tpu as pltpu


# ---------------------------------------------------------------------------
# helpers
# ---------------------------------------------------------------------------
def _cdiv(a, b):
    return (a + b - 1) // b


def _round_up(a, b):
    return _cdiv(a, b) * b


def _vmem_capacity_bytes():
    try:
        return int(pltpu.get_tpu_info().vmem_capacity_bytes)
    except Exception:
        return 64 * 1024 * 1024  # conservative fallback (v7x per-core VMEM)


# ---------------------------------------------------------------------------
# fused single-pass kernel (whole (Bt, C, S) slab fits VMEM)
# ---------------------------------------------------------------------------
def _fused_cs_se_kernel(x_ref, w1t_ref, b1_ref, w2t_ref, b2_ref, wc_ref, bc_ref,
                        o_ref):
    f32 = jnp.float32
    xn = x_ref[...]                                       # (Bt, C, S) native dtype

    # ---- cSE ----  (1/S already folded into w1t -> plain sum; f32 only inside
    # the reduction, never held as a persistent slab)
    squeeze = jnp.sum(xn.astype(f32), axis=-1)            # (Bt, C)
    h = jnp.dot(squeeze, w1t_ref[...], preferred_element_type=f32) + b1_ref[...]
    h = jnp.maximum(h, 0.0)                               # (Bt, Cr)
    cgate = jax.nn.sigmoid(
        jnp.dot(h, w2t_ref[...], preferred_element_type=f32) + b2_ref[...])  # (Bt, C)

    # ---- sSE ----  1x1 conv as broadcast-mul + channel (cross-sublane / XLU)
    # reduce; kept off the MXU on purpose (M=1 matmul would idle the array).
    wc = wc_ref[0].astype(xn.dtype)                       # (C,)
    conv = jnp.sum((xn * wc[None, :, None]).astype(f32), axis=1) + bc_ref[0]  # (Bt, S)
    sgate = jax.nn.sigmoid(conv)                          # (Bt, S)

    # ---- fused gating ----  x*cg + x*sg == x*(cg+sg); gate slab built in the
    # compute dtype so the epilogue stays half-width for bf16 inputs.
    gates = cgate.astype(xn.dtype)[:, :, None] + sgate.astype(xn.dtype)[:, None, :]
    o_ref[...] = (xn * gates).astype(o_ref.dtype)


# ---------------------------------------------------------------------------
# tiled path, kernel 1: spatially-tiled squeeze + cSE gate (pre-pass)
# ---------------------------------------------------------------------------
def _squeeze_gate_kernel(x_ref, w1t_ref, b1_ref, w2t_ref, b2_ref, cg_ref,
                         acc_ref, *, s_true, s_tile):
    f32 = jnp.float32
    j = pl.program_id(1)

    @pl.when(j == 0)
    def _():
        acc_ref[...] = jnp.zeros_like(acc_ref)

    xs = x_ref[...].astype(f32)                           # (Bq, C, St)
    if s_true % s_tile != 0:
        # mask the out-of-range tail lanes of the last spatial tile
        lane = jax.lax.broadcasted_iota(jnp.int32, xs.shape, 2)
        xs = jnp.where(j * s_tile + lane < s_true, xs, 0.0)
    acc_ref[...] += jnp.sum(xs, axis=-1)                  # (Bq, C)

    @pl.when(j == pl.num_programs(1) - 1)
    def _():
        # 1/S folded into w1t -> acc is already the (scaled) squeeze.
        h = jnp.dot(acc_ref[...], w1t_ref[...], preferred_element_type=f32) + b1_ref[...]
        h = jnp.maximum(h, 0.0)
        cg = jax.nn.sigmoid(
            jnp.dot(h, w2t_ref[...], preferred_element_type=f32) + b2_ref[...])
        cg_ref[...] = cg[:, :, None]                      # (Bq, C, 1)


# ---------------------------------------------------------------------------
# tiled path, kernel 2: elementwise gating with a spatial-tile grid axis
# ---------------------------------------------------------------------------
def _gating_kernel(x_ref, cg_ref, wc_ref, bc_ref, o_ref):
    f32 = jnp.float32
    xn = x_ref[...]                                       # (Bg, C, St)
    wc = wc_ref[0].astype(xn.dtype)                       # (C,)
    conv = jnp.sum((xn * wc[None, :, None]).astype(f32), axis=1) + bc_ref[0]  # (Bg, St)
    sgate = jax.nn.sigmoid(conv)
    gates = cg_ref[...].astype(xn.dtype) + sgate.astype(xn.dtype)[:, None, :]  # (Bg,C,St)
    o_ref[...] = (xn * gates).astype(o_ref.dtype)


# ---------------------------------------------------------------------------
# wrapper
# ---------------------------------------------------------------------------
def channel_spatial_se(x, params, *, force_tiled=False, tile_override=None):
    """x: (B, C, H, W). params: dict from make_params. Returns (B, C, H, W)."""
    B, C, H, W = x.shape
    S = H * W
    dtype = x.dtype
    itemsize = jnp.dtype(dtype).itemsize
    Cr = params["w1t"].shape[1]

    # --- per-generation VMEM sizing (v5e/v6e 128 MiB, v7x 64 MiB) ---
    vmem_cap = _vmem_capacity_bytes()
    vmem_limit = min(int(vmem_cap * 0.9), 128 * 1024 * 1024)
    vmem_budget = (vmem_limit * 3) // 4      # headroom for compiler scratch

    # bytes of VMEM per (C * spatial) element of one batch item inside a step:
    # double-buffered in + out slabs (4*itemsize) + ~2 live native temporaries
    # (gate slab, conv product) + 1 transient f32 reduce temp.
    bytes_per_elem = 4 * itemsize + 2 * itemsize + 4

    # narrow & lane-unaligned spatial -> pad (cheap, avoids masked stores
    # dominating); otherwise keep the true S as a full-dim block and skip the
    # extra HBM round-trip of pad + slice.
    pad_spatial = (S % 128 != 0) and (S < 512)
    S_eff = _round_up(S, 128) if pad_spatial else S

    per_b_fused = C * S_eff * bytes_per_elem
    use_tiled = force_tiled or per_b_fused > vmem_budget

    # fold the 1/S of the spatial mean into fc1's weight -> squeeze is a plain sum
    w1t = (params["w1t"].astype(jnp.float32) * (1.0 / float(S))).astype(
        params["w1t"].dtype)

    cparams_1d = pltpu.CompilerParams(dimension_semantics=("parallel",),
                                      vmem_limit_bytes=vmem_limit)

    x_flat = x.reshape(B, C, S)

    if not use_tiled:
        # ------------------------- fused single pass -------------------------
        if pad_spatial:
            x_flat = jnp.pad(x_flat, ((0, 0), (0, 0), (0, S_eff - S)))
        Bt = max(1, min(B, vmem_budget // per_b_fused))
        if B >= 2:
            # keep >= 2 grid steps: shards across v7x's 2 TCs and lets the
            # pipeline overlap DMA with compute.
            Bt = min(Bt, _cdiv(B, 2))
        grid = (_cdiv(B, Bt),)

        out = pl.pallas_call(
            _fused_cs_se_kernel,
            out_shape=jax.ShapeDtypeStruct((B, C, S_eff), dtype),
            grid_spec=pltpu.PrefetchScalarGridSpec(
                num_scalar_prefetch=0,
                grid=grid,
                in_specs=[
                    pl.BlockSpec((Bt, C, S_eff), lambda b: (b, 0, 0)),   # x
                    # constant index_maps -> Mosaic keeps these resident, no
                    # per-step re-DMA of the tiny weights/biases.
                    pl.BlockSpec((C, Cr), lambda b: (0, 0)),             # fc1 W^T (pre-scaled)
                    pl.BlockSpec((1, Cr), lambda b: (0, 0)),             # fc1 b
                    pl.BlockSpec((Cr, C), lambda b: (0, 0)),             # fc2 W^T
                    pl.BlockSpec((1, C), lambda b: (0, 0)),              # fc2 b
                    pl.BlockSpec((1, C), lambda b: (0, 0)),              # 1x1 conv w
                    pl.BlockSpec(memory_space=pltpu.MemorySpace.SMEM),   # conv bias
                ],
                out_specs=pl.BlockSpec((Bt, C, S_eff), lambda b: (b, 0, 0)),
            ),
            compiler_params=cparams_1d,
        )(x_flat, w1t, params["b1"], params["w2t"], params["b2"],
          params["wc"], params["bc"])

        if pad_spatial:
            out = out[:, :, :S]
        return out.reshape(B, C, H, W)

    # --------------------- large C*S: two-kernel split ----------------------
    lane_S = _round_up(S, 128)
    if tile_override is not None:
        Bq, St = tile_override
    else:
        max_elems = max(1, vmem_budget // bytes_per_elem)     # Bq*C*St elements
        St = min(lane_S, max(128, ((max_elems // C) // 128) * 128))
        Bq = max(1, min(B, max_elems // (C * St)))
        if B >= 2:
            Bq = min(Bq, _cdiv(B, 2))
    # TODO(synk): if C alone is so large that a (1, C, 128) block exceeds VMEM,
    # add a channel-tile grid axis (needs partial-channel accumulation for sSE).
    nb, ns = _cdiv(B, Bq), _cdiv(S, St)

    # pre-pass: spatially tiled squeeze accumulation + the two FCs -> cgate(B,C,1)
    cgate = pl.pallas_call(
        functools.partial(_squeeze_gate_kernel, s_true=S, s_tile=St),
        out_shape=jax.ShapeDtypeStruct((B, C, 1), jnp.float32),
        grid_spec=pltpu.PrefetchScalarGridSpec(
            num_scalar_prefetch=0,
            grid=(nb, ns),
            in_specs=[
                pl.BlockSpec((Bq, C, St), lambda i, j: (i, 0, j)),       # x
                pl.BlockSpec((C, Cr), lambda i, j: (0, 0)),
                pl.BlockSpec((1, Cr), lambda i, j: (0, 0)),
                pl.BlockSpec((Cr, C), lambda i, j: (0, 0)),
                pl.BlockSpec((1, C), lambda i, j: (0, 0)),
            ],
            out_specs=pl.BlockSpec((Bq, C, 1), lambda i, j: (i, 0, 0)),
            scratch_shapes=[pltpu.VMEM((Bq, C), jnp.float32)],
        ),
        compiler_params=pltpu.CompilerParams(
            dimension_semantics=("parallel", "arbitrary"),
            vmem_limit_bytes=vmem_limit),
    )(x_flat, w1t, params["b1"], params["w2t"], params["b2"])

    # main pass: purely elementwise, spatially tiled, HBM-roofline bound
    out = pl.pallas_call(
        _gating_kernel,
        out_shape=jax.ShapeDtypeStruct((B, C, S), dtype),
        grid_spec=pltpu.PrefetchScalarGridSpec(
            num_scalar_prefetch=0,
            grid=(nb, ns),
            in_specs=[
                pl.BlockSpec((Bq, C, St), lambda i, j: (i, 0, j)),       # x
                pl.BlockSpec((Bq, C, 1), lambda i, j: (i, 0, 0)),        # cgate
                pl.BlockSpec((1, C), lambda i, j: (0, 0)),               # 1x1 conv w
                pl.BlockSpec(memory_space=pltpu.MemorySpace.SMEM),       # conv bias
            ],
            out_specs=pl.BlockSpec((Bq, C, St), lambda i, j: (i, 0, j)),
        ),
        compiler_params=pltpu.CompilerParams(
            dimension_semantics=("parallel", "parallel"),
            vmem_limit_bytes=vmem_limit),
    )(x_flat, cgate, params["wc"], params["bc"])

    return out.reshape(B, C, H, W)


# ---------------------------------------------------------------------------
# parameters & reference
# ---------------------------------------------------------------------------
def make_params(num_channels, reduction_ratio=2, seed=0):
    """Deterministic synthetic parameters matching the PyTorch module shapes."""
    C = num_channels
    Cr = C // reduction_ratio
    k = jax.random.split(jax.random.PRNGKey(seed), 6)
    w1 = jax.random.normal(k[0], (Cr, C), jnp.float32) * 0.5   # fc1: C -> Cr
    b1 = jax.random.normal(k[1], (Cr,), jnp.float32) * 0.1
    w2 = jax.random.normal(k[2], (C, Cr), jnp.float32) * 0.5   # fc2: Cr -> C
    b2 = jax.random.normal(k[3], (C,), jnp.float32) * 0.1
    wc = jax.random.normal(k[4], (C,), jnp.float32) * 0.5      # Conv2d(C,1,1) weight
    bc = jax.random.normal(k[5], (1,), jnp.float32) * 0.1      # Conv2d bias
    return {
        "w1t": w1.T,                    # (C, Cr)
        "b1": b1.reshape(1, Cr),
        "w2t": w2.T,                    # (Cr, C)
        "b2": b2.reshape(1, C),
        "wc": wc.reshape(1, C),
        "bc": bc,                       # (1,) scalar bias (lives in SMEM)
    }


def reference_forward(x, params):
    """Plain-JAX reference mirroring the PyTorch forward exactly."""
    B, C, H, W = x.shape
    squeeze = x.reshape(B, C, -1).mean(axis=2)                       # (B, C)
    fc1 = jnp.maximum(squeeze @ params["w1t"] + params["b1"], 0.0)   # (B, Cr)
    cgate = jax.nn.sigmoid(fc1 @ params["w2t"] + params["b2"])       # (B, C)
    cse = x * cgate[:, :, None, None]
    conv = jnp.einsum("bchw,c->bhw", x, params["wc"][0]) + params["bc"][0]
    sse = x * jax.nn.sigmoid(conv)[:, None, :, :]
    return cse + sse


if __name__ == "__main__":
    B, C, H, W = 2, 4, 16, 16
    x = jax.random.normal(jax.random.PRNGKey(0), (B, C, H, W), jnp.float32)
    params = make_params(C, reduction_ratio=2, seed=0)
    ref = reference_forward(x, params)

    # default (fused) path
    out = jax.block_until_ready(channel_spatial_se(x, params))
    assert out.shape == (B, C, H, W)
    assert jnp.allclose(out, ref, atol=1e-5, rtol=1e-5), "fused path mismatch"

    # exercise the large-C*S split path (cSE pre-pass + spatially tiled gating)
    out_t = jax.block_until_ready(
        channel_spatial_se(x, params, force_tiled=True, tile_override=(1, 128)))
    assert jnp.allclose(out_t, ref, atol=1e-5, rtol=1e-5), "tiled path mismatch"

    print("KERNEL_OK")
</pallas_src>

<mosaic_0001>
module attributes {stable_mosaic.version = 11 : i64} {
  func.func @_fused_cs_se_kernel(%arg0: i32, %arg1: memref<1x4x256xf32, #tpu.memory_space<vmem>>, %arg2: memref<4x2xf32, #tpu.memory_space<vmem>>, %arg3: memref<1x2xf32, #tpu.memory_space<vmem>>, %arg4: memref<2x4xf32, #tpu.memory_space<vmem>>, %arg5: memref<1x4xf32, #tpu.memory_space<vmem>>, %arg6: memref<1x4xf32, #tpu.memory_space<vmem>>, %arg7: memref<1xf32, #tpu.memory_space<smem>>, %arg8: memref<1x4x256xf32, #tpu.memory_space<vmem>>) attributes {dimension_semantics = [#tpu.dimension_semantics<parallel>], iteration_bounds = array<i64: 2>, scalar_prefetch = 0 : i64, scratch_operands = 0 : i64, tpu.core_type = #tpu.core_type<tc>, window_params = [{transform_indices = @transform_0, window_bounds = array<i64: 1, 4, 256>}, {pipeline_mode = #tpu.pipeline_mode<synchronous>, transform_indices = @transform_1, window_bounds = array<i64: 4, 2>}, {pipeline_mode = #tpu.pipeline_mode<synchronous>, transform_indices = @transform_2, window_bounds = array<i64: 1, 2>}, {pipeline_mode = #tpu.pipeline_mode<synchronous>, transform_indices = @transform_3, window_bounds = array<i64: 2, 4>}, {pipeline_mode = #tpu.pipeline_mode<synchronous>, transform_indices = @transform_4, window_bounds = array<i64: 1, 4>}, {pipeline_mode = #tpu.pipeline_mode<synchronous>, transform_indices = @transform_5, window_bounds = array<i64: 1, 4>}, {transform_indices = @transform_6, window_bounds = array<i64: 1>}, {transform_indices = @transform_7, window_bounds = array<i64: 1, 4, 256>}]} {
    %c0 = arith.constant 0 : index
    %c0_0 = arith.constant 0 : index
    %c0_1 = arith.constant 0 : index
    %0 = vector.load %arg1[%c0, %c0_0, %c0_1] : memref<1x4x256xf32, #tpu.memory_space<vmem>>, vector<1x4x256xf32>
    %cst = arith.constant dense<0.000000e+00> : vector<1x4xf32>
    %1 = vector.multi_reduction <add>, %0, %cst [2] : vector<1x4x256xf32> to vector<1x4xf32>
    %c0_2 = arith.constant 0 : index
    %c0_3 = arith.constant 0 : index
    %2 = vector.load %arg2[%c0_2, %c0_3] : memref<4x2xf32, #tpu.memory_space<vmem>>, vector<4x2xf32>
    %cst_4 = arith.constant dense<0.000000e+00> : vector<1x2xf32>
    %3 = tpu.matmul %1, %2, %cst_4 {dimension_numbers = #tpu.dot_dimension_numbers<[1], [0], [0], [1], [0, 0, 1, 1], [], []>} : vector<1x4xf32>, vector<4x2xf32>, vector<1x2xf32> -> vector<1x2xf32>
    %c0_5 = arith.constant 0 : index
    %c0_6 = arith.constant 0 : index
    %4 = vector.load %arg3[%c0_5, %c0_6] : memref<1x2xf32, #tpu.memory_space<vmem>>, vector<1x2xf32>
    %5 = arith.addf %3, %4 : vector<1x2xf32>
    %cst_7 = arith.constant 0.000000e+00 : f32
    %6 = vector.broadcast %cst_7 : f32 to vector<1x2xf32>
    %7 = arith.maximumf %5, %6 : vector<1x2xf32>
    %c0_8 = arith.constant 0 : index
    %c0_9 = arith.constant 0 : index
    %8 = vector.load %arg4[%c0_8, %c0_9] : memref<2x4xf32, #tpu.memory_space<vmem>>, vector<2x4xf32>
    %cst_10 = arith.constant dense<0.000000e+00> : vector<1x4xf32>
    %9 = tpu.matmul %7, %8, %cst_10 {dimension_numbers = #tpu.dot_dimension_numbers<[1], [0], [0], [1], [0, 0, 1, 1], [], []>} : vector<1x2xf32>, vector<2x4xf32>, vector<1x4xf32> -> vector<1x4xf32>
    %c0_11 = arith.constant 0 : index
    %c0_12 = arith.constant 0 : index
    %10 = vector.load %arg5[%c0_11, %c0_12] : memref<1x4xf32, #tpu.memory_space<vmem>>, vector<1x4xf32>
    %11 = arith.addf %9, %10 : vector<1x4xf32>
    %12 = arith.negf %11 : vector<1x4xf32>
    %13 = math.exp %12 : vector<1x4xf32>
    %cst_13 = arith.constant 1.000000e+00 : f32
    %14 = vector.broadcast %cst_13 : f32 to vector<1x4xf32>
    %15 = arith.addf %14, %13 : vector<1x4xf32>
    %16 = arith.divf %14, %15 : vector<1x4xf32>
    %c0_14 = arith.constant 0 : index
    %c0_15 = arith.constant 0 : index
    %17 = vector.load %arg6[%c0_14, %c0_15] : memref<1x4xf32, #tpu.memory_space<vmem>>, vector<1x4xf32>
    %18 = vector.shape_cast %17 : vector<1x4xf32> to vector<4xf32>
    %19 = vector.shape_cast %18 : vector<4xf32> to vector<1x4x1xf32>
    %20 = vector.broadcast %19 : vector<1x4x1xf32> to vector<1x4x256xf32>
    %21 = arith.mulf %0, %20 : vector<1x4x256xf32>
    %cst_16 = arith.constant dense<0.000000e+00> : vector<1x256xf32>
    %22 = vector.multi_reduction <add>, %21, %cst_16 [1] : vector<1x4x256xf32> to vector<1x256xf32>
    %c0_17 = arith.constant 0 : index
    %23 = memref.load %arg7[%c0_17] : memref<1xf32, #tpu.memory_space<smem>>
    %24 = vector.broadcast %23 : f32 to vector<1x256xf32>
    %25 = arith.addf %22, %24 : vector<1x256xf32>
    %26 = arith.negf %25 : vector<1x256xf32>
    %27 = math.exp %26 : vector<1x256xf32>
    %cst_18 = arith.constant 1.000000e+00 : f32
    %28 = vector.broadcast %cst_18 : f32 to vector<1x256xf32>
    %29 = arith.addf %28, %27 : vector<1x256xf32>
    %30 = arith.divf %28, %29 : vector<1x256xf32>
    %31 = vector.shape_cast %16 : vector<1x4xf32> to vector<1x4x1xf32>
    %32 = vector.shape_cast %30 : vector<1x256xf32> to vector<1x1x256xf32>
    %33 = vector.broadcast %31 : vector<1x4x1xf32> to vector<1x4x256xf32>
    %34 = vector.broadcast %32 : vector<1x1x256xf32> to vector<1x4x256xf32>
    %35 = arith.addf %33, %34 : vector<1x4x256xf32>
    %36 = arith.mulf %0, %35 : vector<1x4x256xf32>
    %c0_19 = arith.constant 0 : index
    %c0_20 = arith.constant 0 : index
    %c0_21 = arith.constant 0 : index
    %37 = vector.load %arg8[%c0_19, %c0_20, %c0_21] : memref<1x4x256xf32, #tpu.memory_space<vmem>>, vector<1x4x256xf32>
    tpu.vector_store %arg8[%c0_19, %c0_20, %c0_21], %36 {strides = array<i32>} : memref<1x4x256xf32, #tpu.memory_space<vmem>>, vector<1x4x256xf32>,
    return
  }
  func.func @transform_0(%arg0: i32) -> (i32, i32, i32) {
    %c0_i32 = arith.constant 0 : i32
    %c0_i32_0 = arith.constant 0 : i32
    %c0_i32_1 = arith.constant 0 : i32
    return %arg0, %c0_i32, %c0_i32_0 : i32, i32, i32
  }
  func.func @transform_1(%arg0: i32) -> (i32, i32) {
    %c0_i32 = arith.constant 0 : i32
    %c0_i32_0 = arith.constant 0 : i32
    %c0_i32_1 = arith.constant 0 : i32
    return %c0_i32, %c0_i32_0 : i32, i32
  }
  func.func @transform_2(%arg0: i32) -> (i32, i32) {
    %c0_i32 = arith.constant 0 : i32
    %c0_i32_0 = arith.constant 0 : i32
    %c0_i32_1 = arith.constant 0 : i32
    return %c0_i32, %c0_i32_0 : i32, i32
  }
  func.func @transform_3(%arg0: i32) -> (i32, i32) {
    %c0_i32 = arith.constant 0 : i32
    %c0_i32_0 = arith.constant 0 : i32
    %c0_i32_1 = arith.constant 0 : i32
    return %c0_i32, %c0_i32_0 : i32, i32
  }
  func.func @transform_4(%arg0: i32) -> (i32, i32) {
    %c0_i32 = arith.constant 0 : i32
    %c0_i32_0 = arith.constant 0 : i32
    %c0_i32_1 = arith.constant 0 : i32
    return %c0_i32, %c0_i32_0 : i32, i32
  }
  func.func @transform_5(%arg0: i32) -> (i32, i32) {
    %c0_i32 = arith.constant 0 : i32
    %c0_i32_0 = arith.constant 0 : i32
    %c0_i32_1 = arith.constant 0 : i32
    return %c0_i32, %c0_i32_0 : i32, i32
  }
  func.func @transform_6(%arg0: i32) -> i32 {
    %c0_i32 = arith.constant 0 : i32
    %c0_i32_0 = arith.constant 0 : i32
    return %c0_i32 : i32
  }
  func.func @transform_7(%arg0: i32) -> (i32, i32, i32) {
    %c0_i32 = arith.constant 0 : i32
    %c0_i32_0 = arith.constant 0 : i32
    %c0_i32_1 = arith.constant 0 : i32
    return %arg0, %c0_i32, %c0_i32_0 : i32, i32, i32
  }
}

</mosaic_0001>

<llo_original>
// kernel: tpu_custom_call.1
$region0: #{tpu_custom_call.1}
  #allocation0 [shape = 'u32[]', space=smem, size = 0x4, offset = 0x4, fixed_abs, tag = 'smem constant byte address 0x4 - core index']
  #allocation1 [shape = 'u32[144,128]{1,0:T(1,128)}', space=vmem, size = 0x12000, scoped, tag = 'internal scratch']
  #allocation2 [shape = 'f32[1]{0:T(128)S(6)}', space=smem, size = 0x200, scoped, tag = 'scoped memory for tpu_custom_call.1']
  %s0 = inlined_call_operand.hbm [shape: f32[2,4,256], index: 0, kind: input, shape index: {}]
  %s1 = inlined_call_operand.vmem [shape: f32[4,2], index: 1, kind: input, shape index: {}]
  %s2 = inlined_call_operand.vmem [shape: f32[1,2], index: 2, kind: input, shape index: {}]
  %s3 = inlined_call_operand.vmem [shape: f32[2,4], index: 3, kind: input, shape index: {}]
  %s4 = inlined_call_operand.vmem [shape: f32[1,4], index: 4, kind: input, shape index: {}]
  %s5 = inlined_call_operand.vmem [shape: f32[1,4], index: 5, kind: input, shape index: {}]
  %s6 = inlined_call_operand.<no memory space> [shape: f32[1], index: 6, kind: input, shape index: {}]
  %s7 = inlined_call_operand.hbm [shape: f32[2,4,256], index: 7, kind: output, shape index: {}]
  %s8 = sld [smem:[#allocation0]]
  $region65: #{tpu_custom_call.1} parent=0
    _
  %s10 = ssub.s32 1, %s8
  %s11 = scalar_select 0, %s10, %s8
  %12 = sst [smem:[#allocation2]] %s6
  $region1: #{tpu_custom_call.1} parent=0
    #allocation3 [shape = 'u8[8192]{0}', space=vmem, size = 0x2000, scoped, tag = 'input window, operand 0']
    #allocation4 [shape = 's32[2]{0}', space=sflag, size = 0x8, scoped, tag = 'scoped memory for tpu_custom_call.1']
    #allocation5 [shape = 's32[2]{0}', space=sflag, size = 0x8, scoped, tag = 'scoped memory for tpu_custom_call.1']
    #allocation6 [shape = 'u8[8192]{0}', space=vmem, size = 0x2000, scoped, tag = 'output window, operand 0']
    %13 = vsyncpa [#allocation4], 0
    %s14 = scalar_lea.sflag [#allocation4], 1
    %15 = vsyncpa %s14, 0
    %16 = vsyncpa [#allocation5], 0
    %s17 = scalar_lea.sflag [#allocation5], 1
    %18 = vsyncpa %s17, 0
    loop: start=0, step=1, limit=4
    $region2: #{tpu_custom_call.1} parent=1 // loop_pre_header
      _
    $region3: #{tpu_custom_call.1} parent=1 // loop_header
      %s20 = sphi 0, %s24
      %p21 = scmp.ge.s32.totalorder %s20, 4
      %s30 = sphi 0, %s32
      %s33 = sphi 0, %s30
      %s34 = sphi 0, %s33
      %s50 = sphi 0, %s34
      %s54 = sphi 0, %s54
      %s56 = sphi 0, %s54
      %s57 = sphi 0, %s56
      %s71 = sphi 0, %s57
      %s75 = sphi 0, %s75
      %s77 = sphi 0, %s75
      %s78 = sphi 0, %s77
      %s92 = sphi 0, %s78
      %s96 = sphi 0, %s96
      %s98 = sphi 0, %s96
      %s99 = sphi 0, %s98
      %s113 = sphi 0, %s99
      %s117 = sphi 0, %s117
      %s119 = sphi 0, %s117
      %s120 = sphi 0, %s119
      %s134 = sphi 0, %s120
      %s138 = sphi 0, %s138
      %s140 = sphi 0, %s138
      %s141 = sphi 0, %s140
      %s155 = sphi 0, %s141
      %s159 = sphi 0, %s159
      %s161 = sphi 0, %s159
      %s162 = sphi 0, %s161
      %s176 = sphi 0, %s162
      %s182 = sphi 0, %s184
      %s185 = sphi 0, %s182
      %s186 = sphi 0, %s185
      %s202 = sphi 0, %s186
    $region4: #{tpu_custom_call.1} parent=1 // loop_header_branch
      %23 = sbr.rel (%p21) target = $region8
    $region5: #{tpu_custom_call.1} parent=1 // loop_body
      %s25 = ssub.s32 %s20, 1
      %s26 = ssub.s32 %s20, 2
      %s27 = sadd.s32 %s20, 1
      %s28 = ssub.s32 %s20, %s27
      %p29 = scmp.eq.s32.totalorder %s28, 0
      %s31 = sadd.s32 %s30, 1
      %s32 = scalar_select %p29, %s30, %s31
      %p35 = pneg %p29
      %p36 = scmp.eq.s32.totalorder %s20, 1
      %p37 = por %p35, %p36
      %p38 = scmp.ne.s32.totalorder %s30, %s33
      %p39 = scmp.eq.s32.totalorder %s20, 0
      %p40 = por %p38, %p39
      %p41 = scmp.ne.s32.totalorder %s30, %s33
      %p42 = scmp.eq.s32.totalorder %s25, 1
      %p43 = por %p41, %p42
      %p44 = scmp.ne.s32.totalorder %s33, %s34
      %p45 = scmp.eq.s32.totalorder %s25, 0
      %p46 = por %p44, %p45
      %p47 = scmp.ne.s32.totalorder %s33, %s34
      %p48 = scmp.eq.s32.totalorder %s26, 1
      %p49 = por %p47, %p48
      %p51 = scmp.ne.s32.totalorder %s34, %s50
      %p52 = scmp.eq.s32.totalorder %s26, 0
      %p53 = por %p51, %p52
      %s55 = sadd.s32 %s54, 1
      %p58 = scmp.eq.s32.totalorder %s20, 1
      %p59 = scmp.ne.s32.totalorder %s54, %s56
      %p60 = scmp.eq.s32.totalorder %s20, 0
      %p61 = por %p59, %p60
      %p62 = scmp.ne.s32.totalorder %s54, %s56
      %p63 = scmp.eq.s32.totalorder %s25, 1
      %p64 = por %p62, %p63
      %p65 = scmp.ne.s32.totalorder %s56, %s57
      %p66 = scmp.eq.s32.totalorder %s25, 0
      %p67 = por %p65, %p66
      %p68 = scmp.ne.s32.totalorder %s56, %s57
      %p69 = scmp.eq.s32.totalorder %s26, 1
      %p70 = por %p68, %p69
      %p72 = scmp.ne.s32.totalorder %s57, %s71
      %p73 = scmp.eq.s32.totalorder %s26, 0
      %p74 = por %p72, %p73
      %s76 = sadd.s32 %s75, 1
      %p79 = scmp.eq.s32.totalorder %s20, 1
      %p80 = scmp.ne.s32.totalorder %s75, %s77
      %p81 = scmp.eq.s32.totalorder %s20, 0
      %p82 = por %p80, %p81
      %p83 = scmp.ne.s32.totalorder %s75, %s77
      %p84 = scmp.eq.s32.totalorder %s25, 1
      %p85 = por %p83, %p84
      %p86 = scmp.ne.s32.totalorder %s77, %s78
      %p87 = scmp.eq.s32.totalorder %s25, 0
      %p88 = por %p86, %p87
      %p89 = scmp.ne.s32.totalorder %s77, %s78
      %p90 = scmp.eq.s32.totalorder %s26, 1
      %p91 = por %p89, %p90
      %p93 = scmp.ne.s32.totalorder %s78, %s92
      %p94 = scmp.eq.s32.totalorder %s26, 0
      %p95 = por %p93, %p94
      %s97 = sadd.s32 %s96, 1
      %p100 = scmp.eq.s32.totalorder %s20, 1
      %p101 = scmp.ne.s32.totalorder %s96, %s98
      %p102 = scmp.eq.s32.totalorder %s20, 0
      %p103 = por %p101, %p102
      %p104 = scmp.ne.s32.totalorder %s96, %s98
      %p105 = scmp.eq.s32.totalorder %s25, 1
      %p106 = por %p104, %p105
      %p107 = scmp.ne.s32.totalorder %s98, %s99
      %p108 = scmp.eq.s32.totalorder %s25, 0
      %p109 = por %p107, %p108
      %p110 = scmp.ne.s32.totalorder %s98, %s99
      %p111 = scmp.eq.s32.totalorder %s26, 1
      %p112 = por %p110, %p111
      %p114 = scmp.ne.s32.totalorder %s99, %s113
      %p115 = scmp.eq.s32.totalorder %s26, 0
      %p116 = por %p114, %p115
      %s118 = sadd.s32 %s117, 1
      %p121 = scmp.eq.s32.totalorder %s20, 1
      %p122 = scmp.ne.s32.totalorder %s117, %s119
      %p123 = scmp.eq.s32.totalorder %s20, 0
      %p124 = por %p122, %p123
      %p125 = scmp.ne.s32.totalorder %s117, %s119
      %p126 = scmp.eq.s32.totalorder %s25, 1
      %p127 = por %p125, %p126
      %p128 = scmp.ne.s32.totalorder %s119, %s120
      %p129 = scmp.eq.s32.totalorder %s25, 0
      %p130 = por %p128, %p129
      %p131 = scmp.ne.s32.totalorder %s119, %s120
      %p132 = scmp.eq.s32.totalorder %s26, 1
      %p133 = por %p131, %p132
      %p135 = scmp.ne.s32.totalorder %s120, %s134
      %p136 = scmp.eq.s32.totalorder %s26, 0
      %p137 = por %p135, %p136
      %s139 = sadd.s32 %s138, 1
      %p142 = scmp.eq.s32.totalorder %s20, 1
      %p143 = scmp.ne.s32.totalorder %s138, %s140
      %p144 = scmp.eq.s32.totalorder %s20, 0
      %p145 = por %p143, %p144
      %p146 = scmp.ne.s32.totalorder %s138, %s140
      %p147 = scmp.eq.s32.totalorder %s25, 1
      %p148 = por %p146, %p147
      %p149 = scmp.ne.s32.totalorder %s140, %s141
      %p150 = scmp.eq.s32.totalorder %s25, 0
      %p151 = por %p149, %p150
      %p152 = scmp.ne.s32.totalorder %s140, %s141
      %p153 = scmp.eq.s32.totalorder %s26, 1
      %p154 = por %p152, %p153
      %p156 = scmp.ne.s32.totalorder %s141, %s155
      %p157 = scmp.eq.s32.totalorder %s26, 0
      %p158 = por %p156, %p157
      %s160 = sadd.s32 %s159, 1
      %p163 = scmp.eq.s32.totalorder %s20, 1
      %p164 = scmp.ne.s32.totalorder %s159, %s161
      %p165 = scmp.eq.s32.totalorder %s20, 0
      %p166 = por %p164, %p165
      %p167 = scmp.ne.s32.totalorder %s159, %s161
      %p168 = scmp.eq.s32.totalorder %s25, 1
      %p169 = por %p167, %p168
      %p170 = scmp.ne.s32.totalorder %s161, %s162
      %p171 = scmp.eq.s32.totalorder %s25, 0
      %p172 = por %p170, %p171
      %p173 = scmp.ne.s32.totalorder %s161, %s162
      %p174 = scmp.eq.s32.totalorder %s26, 1
      %p175 = por %p173, %p174
      %p177 = scmp.ne.s32.totalorder %s162, %s176
      %p178 = scmp.eq.s32.totalorder %s26, 0
      %p179 = por %p177, %p178
      %s180 = ssub.s32 %s20, %s27
      %p181 = scmp.eq.s32.totalorder %s180, 0
      %s183 = sadd.s32 %s182, 1
      %s184 = scalar_select %p181, %s182, %s183
      %p187 = pneg %p181
      %p188 = scmp.eq.s32.totalorder %s20, 1
      %p189 = por %p187, %p188
      %p190 = scmp.ne.s32.totalorder %s182, %s185
      %p191 = scmp.eq.s32.totalorder %s20, 0
      %p192 = por %p190, %p191
      %p193 = scmp.ne.s32.totalorder %s182, %s185
      %p194 = scmp.eq.s32.totalorder %s25, 1
      %p195 = por %p193, %p194
      %p196 = scmp.ne.s32.totalorder %s185, %s186
      %p197 = scmp.eq.s32.totalorder %s25, 0
      %p198 = por %p196, %p197
      %p199 = scmp.ne.s32.totalorder %s185, %s186
      %p200 = scmp.eq.s32.totalorder %s26, 1
      %p201 = por %p199, %p200
      %p203 = scmp.ne.s32.totalorder %s186, %s202
      %p204 = scmp.eq.s32.totalorder %s26, 0
      %p205 = por %p203, %p204
      %p206 = scmp.le.s32.totalorder 1, %s20
      %p207 = scmp.lt.s32.totalorder %s20, 3
      %p208 = pnand %p206, %p207
      %p209 = pneg %p208
      // Predicated region
      $region9: #{tpu_custom_call.1} parent=5 // pred_check
        _
      $region10: #{tpu_custom_call.1} parent=5 // pred_check_branch
        %211 = sbr.rel (%p208) target = $region12
      $region11: #{tpu_custom_call.1} parent=5 // pred_region
        %s212 = ssub.s32 %s20, 1
        // Predicated region
        $region13: #{tpu_custom_call.1} parent=11 // pred_check
          %p213 = pneg %p67
        $region14: #{tpu_custom_call.1} parent=11 // pred_check_branch
          %215 = sbr.rel (%p213) target = $region16
        $region15: #{tpu_custom_call.1} parent=11 // pred_region
          _
        $region16: #{tpu_custom_call.1} parent=11 // pred_fallthru
          _
        // Predicated region
        $region17: #{tpu_custom_call.1} parent=11 // pred_check
          %p216 = pneg %p88
        $region18: #{tpu_custom_call.1} parent=11 // pred_check_branch
          %218 = sbr.rel (%p216) target = $region20
        $region19: #{tpu_custom_call.1} parent=11 // pred_region
          _
        $region20: #{tpu_custom_call.1} parent=11 // pred_fallthru
          _
        // Predicated region
        $region21: #{tpu_custom_call.1} parent=11 // pred_check
          %p219 = pneg %p109
        $region22: #{tpu_custom_call.1} parent=11 // pred_check_branch
          %221 = sbr.rel (%p219) target = $region24
        $region23: #{tpu_custom_call.1} parent=11 // pred_region
          _
        $region24: #{tpu_custom_call.1} parent=11 // pred_fallthru
          _
        // Predicated region
        $region25: #{tpu_custom_call.1} parent=11 // pred_check
          %p222 = pneg %p130
        $region26: #{tpu_custom_call.1} parent=11 // pred_check_branch
          %224 = sbr.rel (%p222) target = $region28
        $region27: #{tpu_custom_call.1} parent=11 // pred_region
          _
        $region28: #{tpu_custom_call.1} parent=11 // pred_fallthru
          _
        // Predicated region
        $region29: #{tpu_custom_call.1} parent=11 // pred_check
          %p225 = pneg %p151
        $region30: #{tpu_custom_call.1} parent=11 // pred_check_branch
          %227 = sbr.rel (%p225) target = $region32
        $region31: #{tpu_custom_call.1} parent=11 // pred_region
          _
        $region32: #{tpu_custom_call.1} parent=11 // pred_fallthru
          _
        // Predicated region
        $region33: #{tpu_custom_call.1} parent=11 // pred_check
          %p228 = pneg %p172
        $region34: #{tpu_custom_call.1} parent=11 // pred_check_branch
          %230 = sbr.rel (%p228) target = $region36
        $region35: #{tpu_custom_call.1} parent=11 // pred_region
          _
        $region36: #{tpu_custom_call.1} parent=11 // pred_fallthru
          _
      $region12: #{tpu_custom_call.1} parent=5 // pred_fallthru
        _
      %p231 = scmp.lt.s32.totalorder %s20, 2
      // Predicated region
      $region37: #{tpu_custom_call.1} parent=5 // pred_check
        %p232 = pneg %p231
      $region38: #{tpu_custom_call.1} parent=5 // pred_check_branch
        %234 = sbr.rel (%p232) target = $region40
      $region39: #{tpu_custom_call.1} parent=5 // pred_region
        // Predicated region
        $region41: #{tpu_custom_call.1} parent=39 // pred_check
          %p235 = pneg %p40
        $region42: #{tpu_custom_call.1} parent=39 // pred_check_branch
          %237 = sbr.rel (%p235) target = $region44
        $region43: #{tpu_custom_call.1} parent=39 // pred_region
          %s238 = sand.u32 %s30, 1
          %s239 = scalar_lea.sflag [#allocation4], %s238
          %s240 = sand.u32 %s30, 1
          %s241 = smul.addr %s240, 8
          %s242 = scalar_lea.vmem [#allocation3], %s241
          %s244 = ssub.s32 128, 128
          %245 = vsyncadd %s239, %s244
          %s246 = smul.addr %s20, 2
          %s247 = smul.addr %s246, 64
          %s248 = scalar_lea.hbm %s0, %s247
          %s250 = sshll.u32 %s242, 4
          %s251 = int_to_ptr.vmem [resolvable:$true] %s250
          %253 = dma.hbm_to_vmem [thread:$0]  %s248, 128, %s251, %s239
        $region44: #{tpu_custom_call.1} parent=39 // pred_fallthru
          _
      $region40: #{tpu_custom_call.1} parent=5 // pred_fallthru
        _
      %p254 = scmp.le.s32.totalorder 1, %s20
      %p255 = scmp.lt.s32.totalorder %s20, 3
      %p256 = pnand %p254, %p255
      %p257 = pneg %p256
      // Predicated region
      $region45: #{tpu_custom_call.1} parent=5 // pred_check
        _
      $region46: #{tpu_custom_call.1} parent=5 // pred_check_branch
        %259 = sbr.rel (%p256) target = $region48
      $region47: #{tpu_custom_call.1} parent=5 // pred_region
        %s260 = ssub.s32 %s20, 1
        %s261 = sand.u32 %s33, 1
        %s262 = scalar_lea.sflag [#allocation4], %s261
        %s263 = sand.u32 %s33, 1
        %s264 = smul.addr %s263, 8
        %s265 = scalar_lea.vmem [#allocation3], %s264
        // Predicated region
        $region49: #{tpu_custom_call.1} parent=47 // pred_check
          %p266 = pneg %p46
        $region50: #{tpu_custom_call.1} parent=47 // pred_check_branch
          %268 = sbr.rel (%p266) target = $region52
        $region51: #{tpu_custom_call.1} parent=47 // pred_region
          %269 = dma.done %s262, 128
        $region52: #{tpu_custom_call.1} parent=47 // pred_fallthru
          _
        %s270 = sand.u32 %s33, 1
        %s271 = scalar_lea.sflag [#allocation4], %s270
        %s272 = sand.u32 %s33, 1
        %s273 = smul.addr %s272, 8
        %s274 = scalar_lea.vmem [#allocation3], %s273
        %p275 = pneg %p46
        %p276 = pneg %p43
        %p277 = pneg %p67
        %p278 = pneg %p64
        %p279 = pneg %p88
        %p280 = pneg %p85
        %p281 = pneg %p109
        %p282 = pneg %p106
        %p283 = pneg %p130
        %p284 = pneg %p127
        %p285 = pneg %p151
        %p286 = pneg %p148
        %p287 = pneg %p172
        %p288 = pneg %p169
        %p289 = pneg %p198
        %p290 = pneg %p195
        %s291 = sand.u32 %s185, 1
        %s292 = scalar_lea.sflag [#allocation5], %s291
        %s293 = sand.u32 %s185, 1
        %s294 = smul.addr %s293, 8
        %s295 = scalar_lea.vmem [#allocation6], %s294
        %v296 = vld [vmem:[%s265] sm:$0xff]
        %v298 = vcombine.high %v296, %v296
        %vm300 = vcmask 1043456
        %v301 = vsel %vm300, %v296, 0.0
        %v302 = vsel %vm300, %v298, 0.0
        %v303 = vadd.f32 %v301, %v302
        %304 = vadd.xlane.f32.xlu0 %v303
        %v305 = vpop.xlane.xlu0 %304
        %v306 = vld [vmem:[%s1] sm:$0xf]
        %v307 = vld [vmem:[%s2] sm:$0x1]
        %v309 = vlaneseq
        %v310 = vand.u32 %v309, 127
        %v311 = vlaneseq
        %v312 = vshrl.u32 %v311, 7
        %v313 = vsub.s32 %v310, %v312
        %v314 = vrot.slane %v305, %v313
        %vm315 = vcmask 31744
        %v316 = vsel %vm315, %v314, 0
        %v319 = vsel %vm300, %v306, 0
        %321 = vmatprep.subr.mxu0 0.0
        %322 = vmatpush1.msra.mxu0 0.0
        %323 = vmatprep.subr.mxu0 0.0
        %324 = vmatpush1.msra.mxu0 0.0
        %325 = vmatprep.subr.mxu0 0.0
        %326 = vmatpush1.msra.mxu0 0.0
        %327 = vmatprep.subr.mxu0 0.0
        %328 = vmatpush1.msra.mxu0 0.0
        %329 = vmatprep.subr.mxu0 0.0
        %330 = vmatpush1.msra.mxu0 0.0
        %331 = vmatprep.subr.mxu0 0.0
        %332 = vmatpush1.msra.mxu0 0.0
        %333 = vmatprep.subr.mxu0 0.0
        %334 = vmatpush1.msra.mxu0 0.0
        %335 = vmatprep.subr.mxu0 0.0
        %336 = vmatpush1.msra.mxu0 0.0
        %337 = vmatprep.subr.mxu0 0.0
        %338 = vmatpush1.msra.mxu0 0.0
        %339 = vmatprep.subr.mxu0 0.0
        %340 = vmatpush1.msra.mxu0 0.0
        %341 = vmatprep.subr.mxu0 0.0
        %342 = vmatpush1.msra.mxu0 0.0
        %343 = vmatprep.subr.mxu0 0.0
        %344 = vmatpush1.msra.mxu0 0.0
        %345 = vmatprep.subr.mxu0 0.0
        %346 = vmatpush1.msra.mxu0 0.0
        %347 = vmatprep.subr.mxu0 0.0
        %348 = vmatpush1.msra.mxu0 0.0
        %349 = vmatprep.subr.mxu0 0.0
        %350 = vmatpush1.msra.mxu0 0.0
        %351 = vmatprep.subr.mxu0 0.0
        %352 = vmatpush1.msra.mxu0 %v319
        %353 = vmatprep.subr.mxu0 0.0
        %354 = vmatpush2.msra.mxu0 0.0
        %355 = vmatprep.subr.mxu0 0.0
        %356 = vmatpush2.msra.mxu0 0.0
        %357 = vmatprep.subr.mxu0 0.0
        %358 = vmatpush2.msra.mxu0 0.0
        %359 = vmatprep.subr.mxu0 0.0
        %360 = vmatpush2.msra.mxu0 0.0
        %361 = vmatprep.subr.mxu0 0.0
        %362 = vmatpush2.msra.mxu0 0.0
        %363 = vmatprep.subr.mxu0 0.0
        %364 = vmatpush2.msra.mxu0 0.0
        %365 = vmatprep.subr.mxu0 0.0
        %366 = vmatpush2.msra.mxu0 0.0
        %367 = vmatprep.subr.mxu0 0.0
        %368 = vmatpush2.msra.mxu0 0.0
        %369 = vmatprep.subr.mxu0 0.0
        %370 = vmatpush2.msra.mxu0 0.0
        %371 = vmatprep.subr.mxu0 0.0
        %372 = vmatpush2.msra.mxu0 0.0
        %373 = vmatprep.subr.mxu0 0.0
        %374 = vmatpush2.msra.mxu0 0.0
        %375 = vmatprep.subr.mxu0 0.0
        %376 = vmatpush2.msra.mxu0 0.0
        %377 = vmatprep.subr.mxu0 0.0
        %378 = vmatpush2.msra.mxu0 0.0
        %379 = vmatprep.subr.mxu0 0.0
        %380 = vmatpush2.msra.mxu0 0.0
        %381 = vmatprep.subr.mxu0 0.0
        %382 = vmatpush2.msra.mxu0 0.0
        %383 = vmatprep.subr.mxu0 0.0
        %384 = vmatpush2.msra.mxu0 0.0
        %385 = vmatprep.mubr.f32.mxu0 0.0
        %386 = vmatmul.mubr.f32.gmra.mxu0 %v316
        %v387 = vpop.f32.mrf.mxu0
        %v388 = vadd.f32 %v307, %v387
        %v389 = vpop.f32.mrf.mxu0
        %390 = vdwg.mxu0
        %v391 = vmax.f32 %v388, 0.0
        %v392 = vld [vmem:[%s3] sm:$0x3]
        %v393 = vld [vmem:[%s4] sm:$0x1]
        %vm394 = vcmask 15360
        %v396 = vsel %vm394, %v391, 0
        %vm398 = vcmask 1041408
        %v400 = vsel %vm398, %v392, 0
        %402 = vmatprep.subr.mxu0 0.0
        %403 = vmatpush1.msra.mxu0 0.0
        %404 = vmatprep.subr.mxu0 0.0
        %405 = vmatpush1.msra.mxu0 0.0
        %406 = vmatprep.subr.mxu0 0.0
        %407 = vmatpush1.msra.mxu0 0.0
        %408 = vmatprep.subr.mxu0 0.0
        %409 = vmatpush1.msra.mxu0 0.0
        %410 = vmatprep.subr.mxu0 0.0
        %411 = vmatpush1.msra.mxu0 0.0
        %412 = vmatprep.subr.mxu0 0.0
        %413 = vmatpush1.msra.mxu0 0.0
        %414 = vmatprep.subr.mxu0 0.0
        %415 = vmatpush1.msra.mxu0 0.0
        %416 = vmatprep.subr.mxu0 0.0
        %417 = vmatpush1.msra.mxu0 0.0
        %418 = vmatprep.subr.mxu0 0.0
        %419 = vmatpush1.msra.mxu0 0.0
        %420 = vmatprep.subr.mxu0 0.0
        %421 = vmatpush1.msra.mxu0 0.0
        %422 = vmatprep.subr.mxu0 0.0
        %423 = vmatpush1.msra.mxu0 0.0
        %424 = vmatprep.subr.mxu0 0.0
        %425 = vmatpush1.msra.mxu0 0.0
        %426 = vmatprep.subr.mxu0 0.0
        %427 = vmatpush1.msra.mxu0 0.0
        %428 = vmatprep.subr.mxu0 0.0
        %429 = vmatpush1.msra.mxu0 0.0
        %430 = vmatprep.subr.mxu0 0.0
        %431 = vmatpush1.msra.mxu0 0.0
        %432 = vmatprep.subr.mxu0 0.0
        %433 = vmatpush1.msra.mxu0 %v400
        %434 = vmatprep.subr.mxu0 0.0
        %435 = vmatpush2.msra.mxu0 0.0
        %436 = vmatprep.subr.mxu0 0.0
        %437 = vmatpush2.msra.mxu0 0.0
        %438 = vmatprep.subr.mxu0 0.0
        %439 = vmatpush2.msra.mxu0 0.0
        %440 = vmatprep.subr.mxu0 0.0
        %441 = vmatpush2.msra.mxu0 0.0
        %442 = vmatprep.subr.mxu0 0.0
        %443 = vmatpush2.msra.mxu0 0.0
        %444 = vmatprep.subr.mxu0 0.0
        %445 = vmatpush2.msra.mxu0 0.0
        %446 = vmatprep.subr.mxu0 0.0
        %447 = vmatpush2.msra.mxu0 0.0
        %448 = vmatprep.subr.mxu0 0.0
        %449 = vmatpush2.msra.mxu0 0.0
        %450 = vmatprep.subr.mxu0 0.0
        %451 = vmatpush2.msra.mxu0 0.0
        %452 = vmatprep.subr.mxu0 0.0
        %453 = vmatpush2.msra.mxu0 0.0
        %454 = vmatprep.subr.mxu0 0.0
        %455 = vmatpush2.msra.mxu0 0.0
        %456 = vmatprep.subr.mxu0 0.0
        %457 = vmatpush2.msra.mxu0 0.0
        %458 = vmatprep.subr.mxu0 0.0
        %459 = vmatpush2.msra.mxu0 0.0
        %460 = vmatprep.subr.mxu0 0.0
        %461 = vmatpush2.msra.mxu0 0.0
        %462 = vmatprep.subr.mxu0 0.0
        %463 = vmatpush2.msra.mxu0 0.0
        %464 = vmatprep.subr.mxu0 0.0
        %465 = vmatpush2.msra.mxu0 0.0
        %466 = vmatprep.mubr.f32.mxu0 0.0
        %467 = vmatmul.mubr.f32.gmra.mxu0 %v396
        %v468 = vpop.f32.mrf.mxu0
        %v469 = vadd.f32 %v393, %v468
        %v470 = vpop.f32.mrf.mxu0
        %471 = vdwg.mxu0
        %v472 = vxor.u32 %v469, 2147483648
        %v473 = vmul.f32 %v472, 1.442695
        %v474 = vpow.pop %v473
        %v475 = vadd.f32 %v474, 1.0
        %v476 = vrcp.pop %v475
        %v477 = vmul.f32 1.0, %v476
        %v478 = vld [vmem:[%s5] sm:$0x1]
        %v479 = vlaneseq
        %v480 = vshrl.u32 %v479, 7
        %v481 = vsub.s32 0, %v480
        %v482 = vrot.slane %v478, %v481
        %484 = vbcast.lane.b32.xlu0 %v482, 256
        %v485 = vpop.permute.xlu0 %484
        %v488 = vunpack.c.l.s4 839922192
        %v489 = vunpack.c.0.s8 %v488
        %v490 = vlaneseq
        %v491 = vshrl.u32 %v490, 7
        %v492 = vsub.s32 %v489, %v491
        %v493 = vrot.slane %v485, %v492
        %v495 = vmul.f32 %v296, %v493
        %v497 = vcombine.high %v495, %v495
        %v499 = vsel %vm300, %v495, 0.0
        %v500 = vrot.slane %v499, 4
        %v501 = vadd.f32 %v499, %v500
        %v502 = vrot.slane %v501, 2
        %v503 = vadd.f32 %v501, %v502
        %v504 = vrot.slane %v503, 1
        %v505 = vadd.f32 %v503, %v504
        %v506 = vsel %vm300, %v497, 0.0
        %v507 = vrot.slane %v506, 4
        %v508 = vadd.f32 %v506, %v507
        %v509 = vrot.slane %v508, 2
        %v510 = vadd.f32 %v508, %v509
        %v511 = vrot.slane %v510, 1
        %v512 = vadd.f32 %v510, %v511
        %s513 = sld [smem:[#allocation2]]
        %v514 = vstv %s513
        %v515 = vadd.f32 %v505, %v514
        %v516 = vadd.f32 %v512, %v514
        %v517 = vxor.u32 %v515, 2147483648
        %v518 = vxor.u32 %v516, 2147483648
        %v519 = vmul.f32 %v517, 1.442695
        %v520 = vpow.pop %v519
        %v521 = vmul.f32 %v518, 1.442695
        %v522 = vpow.pop %v521
        %v523 = vadd.f32 %v520, 1.0
        %v524 = vadd.f32 %v522, 1.0
        %v525 = vrcp.pop %v523
        %v526 = vmul.f32 1.0, %v525
        %v527 = vrcp.pop %v524
        %v528 = vmul.f32 1.0, %v527
        %v529 = vlaneseq
        %v530 = vshrl.u32 %v529, 7
        %v531 = vsub.s32 0, %v530
        %v532 = vrot.slane %v477, %v531
        %534 = vbcast.lane.b32.xlu0 %v532, 256
        %v535 = vpop.permute.xlu0 %534
        %v536 = vadd.f32 %v535, %v526
        %v537 = vadd.f32 %v535, %v528
        %v540 = vcombine.low %v536, %v537
        %v542 = vmul.f32 %v296, %v540
        %543 = vst [vmem:[%s295] sm:$0xff] %v542
        %s544 = sand.u32 %s185, 1
        %s545 = scalar_lea.sflag [#allocation5], %s544
        %s546 = sand.u32 %s185, 1
        %s547 = smul.addr %s546, 8
        %s548 = scalar_lea.vmem [#allocation6], %s547
        // Predicated region
        $region53: #{tpu_custom_call.1} parent=47 // pred_check
          %p549 = pneg %p195
        $region54: #{tpu_custom_call.1} parent=47 // pred_check_branch
          %551 = sbr.rel (%p549) target = $region56
        $region55: #{tpu_custom_call.1} parent=47 // pred_region
          %s553 = ssub.s32 128, 128
          %554 = vsyncadd %s545, %s553
          %s555 = smul.addr %s25, 2
          %s556 = smul.addr %s555, 64
          %s557 = scalar_lea.hbm %s7, %s556
          %s559 = sshll.u32 %s548, 4
          %s560 = int_to_ptr.vmem [resolvable:$true] %s559
          %562 = dma.vmem_to_hbm [thread:$0]  %s560, 128, %s557, %s545
        $region56: #{tpu_custom_call.1} parent=47 // pred_fallthru
          _
      $region48: #{tpu_custom_call.1} parent=5 // pred_fallthru
        _
      %p563 = scmp.le.s32.totalorder 2, %s20
      // Predicated region
      $region57: #{tpu_custom_call.1} parent=5 // pred_check
        %p564 = pneg %p563
      $region58: #{tpu_custom_call.1} parent=5 // pred_check_branch
        %566 = sbr.rel (%p564) target = $region60
      $region59: #{tpu_custom_call.1} parent=5 // pred_region
        %s567 = ssub.s32 %s20, 2
        // Predicated region
        $region61: #{tpu_custom_call.1} parent=59 // pred_check
          %p568 = pneg %p201
        $region62: #{tpu_custom_call.1} parent=59 // pred_check_branch
          %570 = sbr.rel (%p568) target = $region64
        $region63: #{tpu_custom_call.1} parent=59 // pred_region
          %s571 = sand.u32 %s186, 1
          %s572 = scalar_lea.sflag [#allocation5], %s571
          %s573 = sand.u32 %s186, 1
          %s574 = smul.addr %s573, 8
          %s575 = scalar_lea.vmem [#allocation6], %s574
          %576 = dma.done %s572, 128
        $region64: #{tpu_custom_call.1} parent=59 // pred_fallthru
          _
      $region60: #{tpu_custom_call.1} parent=5 // pred_fallthru
        _
    $region6: #{tpu_custom_call.1} parent=1 // loop_footer
      %s24 = sadd.s32 1, %s20
    $region7: #{tpu_custom_call.1} parent=1 // loop_footer_branch
      %19 = sbr.rel target = $region3
    $region8: #{tpu_custom_call.1} parent=1 // loop_exit
      _
    %577 = vsyncpa [#allocation4], 1
    %s578 = scalar_lea.sflag [#allocation4], 1
    %579 = vsyncpa %s578, 1
    %580 = vsyncpa [#allocation5], 1
    %s581 = scalar_lea.sflag [#allocation5], 1
    %582 = vsyncpa %s581, 1

</llo_original>
